<compile_context>
chip_gen: v6e
topology: v6e:2x2x1
jax: 0.10.0
libtpu: 0.0.40
codegen_flags: <defaults>
</compile_context>

<pallas_src>
import jax
import jax.numpy as jnp
from jax import lax
from jax.experimental import pallas as pl
from jax.experimental.pallas import tpu as pltpu


def _round_up(x, m):
    return (x + m - 1) // m * m


def mlp_kernel(x_ref, w1_ref, b1_ref, w2_ref, b2_ref, w3_ref, b3_ref,
               w4_ref, b4_ref, o_ref):
    """One batch tile of the fused MLP.

    x_ref : (TB, input_size)   compute dtype (f32 or bf16)
    w*    : (in, out)          compute dtype (w4 is a (1, hidden//4) f32 row)
    b*    : (1, out)           f32
    o_ref : (1, TB)            f32  -- lane-dense output tile
    """
    f32 = jnp.float32
    # Layers 1-3: batch rows live in sublanes; MXU matmuls accumulate in f32;
    # bias-add + tanh stay in f32 (tanh runs on the EUP slot -> free while the
    # kernel is memory-bound).
    h = jnp.tanh(jnp.dot(x_ref[...], w1_ref[...], preferred_element_type=f32)
                 + b1_ref[...])
    h = jnp.tanh(jnp.dot(h.astype(w2_ref.dtype), w2_ref[...],
                         preferred_element_type=f32) + b2_ref[...])
    h = jnp.tanh(jnp.dot(h.astype(w3_ref.dtype), w3_ref[...],
                         preferred_element_type=f32) + b3_ref[...])
    # Layer 4 (one scalar per row), kept in f32 for precision. Contract the
    # feature axis of `h` against the single w4 row so the result comes out as
    # (1, TB): lane-dense, full-width stores instead of a (TB, 1) masked column.
    out = lax.dot_general(w4_ref[...], h, (((1,), (1,)), ((), ())),
                          preferred_element_type=f32)        # (1, TB)
    o_ref[...] = out + b4_ref[...]                           # b4 is (1, 1)


def mlp_forward(x, params, *, block_rows=1024, use_bf16=True):
    """x: (B, input_size) f32. Returns (B,) f32 (matches PyTorch out.view(-1)).

    params: dict of (in, out) weights "w1..w4" and (1, out) biases "b1..b4".
    """
    B, in_size = x.shape
    compute_dtype = jnp.bfloat16 if use_bf16 else jnp.float32

    # --- batch tiling --------------------------------------------------------
    # Row tile: multiple of 8 sublanes (and a multiple of 128 at the default
    # block_rows, keeping the output store fully lane-dense). At block_rows=1024
    # the double-buffered x tile + activations are ~1-2 MiB even lane-padded,
    # comfortably inside every generation's default scoped VMEM; raise
    # vmem_limit_bytes via pltpu.CompilerParams if you raise block_rows a lot.
    tb = min(block_rows, _round_up(B, 8))
    tb = max(8, (tb // 8) * 8)
    bp = _round_up(B, tb)
    grid = bp // tb

    xp = x if bp == B else jnp.pad(x, ((0, bp - B), (0, 0)))
    xp = xp.astype(compute_dtype)          # bf16 halves the dominant HBM stream

    w1 = params["w1"].astype(compute_dtype)
    w2 = params["w2"].astype(compute_dtype)
    w3 = params["w3"].astype(compute_dtype)
    b1, b2, b3 = params["b1"], params["b2"], params["b3"]
    # Layer 4 stays f32; store its weight as a (1, hidden//4) row vector.
    w4_row = params["w4"].reshape(1, -1).astype(jnp.float32)
    b4 = params["b4"].reshape(1, 1).astype(jnp.float32)

    # Weights/biases: full-array blocks with constant index_map -> VMEM-resident.
    const_spec = lambda a: pl.BlockSpec(a.shape, lambda i, n=a.ndim: (0,) * n)

    out = pl.pallas_call(
        mlp_kernel,
        out_shape=jax.ShapeDtypeStruct((grid, tb), jnp.float32),
        grid=(grid,),
        in_specs=[
            pl.BlockSpec((tb, in_size), lambda i: (i, 0)),   # pipelined x tile
            const_spec(w1), const_spec(b1),
            const_spec(w2), const_spec(b2),
            const_spec(w3), const_spec(b3),
            const_spec(w4_row), const_spec(b4),
        ],
        out_specs=pl.BlockSpec((1, tb), lambda i: (i, 0)),   # lane-dense rows
        compiler_params=pltpu.CompilerParams(
            dimension_semantics=("parallel",),   # v7x: shard batch over both TCs
        ),
    )(xp, w1, b1, w2, b2, w3, b3, w4_row, b4)

    # Rows of `out` are consecutive batch tiles; flatten and drop padding.
    return out.reshape(-1)[:B]


def init_params(key, input_size, hidden_size):
    """Deterministic init matching nn.Linear shapes (weights stored transposed)."""
    sizes = [
        (input_size, hidden_size),
        (hidden_size, hidden_size // 2),
        (hidden_size // 2, hidden_size // 4),
        (hidden_size // 4, 1),
    ]
    params = {}
    for i, (fan_in, fan_out) in enumerate(sizes, start=1):
        key, kw, kb = jax.random.split(key, 3)
        bound = 1.0 / (fan_in ** 0.5)
        params[f"w{i}"] = jax.random.uniform(
            kw, (fan_in, fan_out), jnp.float32, -bound, bound)
        params[f"b{i}"] = jax.random.uniform(
            kb, (1, fan_out), jnp.float32, -bound, bound)
    return params


def mlp_reference(x, params):
    h = jnp.tanh(x @ params["w1"] + params["b1"])
    h = jnp.tanh(h @ params["w2"] + params["b2"])
    h = jnp.tanh(h @ params["w3"] + params["b3"])
    out = h @ params["w4"] + params["b4"]
    return out.reshape(-1)


if __name__ == "__main__":
    key = jax.random.PRNGKey(0)
    batch, input_size, hidden_size = 8, 16, 32

    key, kx = jax.random.split(key)
    x = jax.random.normal(kx, (batch, input_size), jnp.float32)
    params = init_params(key, input_size, hidden_size)

    # f32 path (exact vs. reference), single grid step.
    y = mlp_forward(x, params, block_rows=128, use_bf16=False)
    jax.block_until_ready(y)
    y_ref = mlp_reference(x, params)
    assert y.shape == (batch,)
    assert jnp.allclose(y, y_ref, atol=1e-5, rtol=1e-5)

    # Larger, non-tile-multiple batch: exercises the pipelined batch grid
    # (3 steps of 128 rows, padded) and the bf16 input/weight feed.
    batch2 = 300
    key, kx2 = jax.random.split(key)
    x2 = jax.random.normal(kx2, (batch2, input_size), jnp.float32)
    y2 = mlp_forward(x2, params, block_rows=128, use_bf16=True)
    jax.block_until_ready(y2)
    y2_ref = mlp_reference(x2, params)
    assert y2.shape == (batch2,)
    assert jnp.allclose(y2, y2_ref, atol=5e-2, rtol=5e-2)   # bf16 feed tolerance

    print("KERNEL_OK")
</pallas_src>

<mosaic_0001>
module attributes {stable_mosaic.version = 11 : i64} {
  func.func @mlp_kernel(%arg0: i32, %arg1: memref<8x16xf32, #tpu.memory_space<vmem>>, %arg2: memref<16x32xf32, #tpu.memory_space<vmem>>, %arg3: memref<1x32xf32, #tpu.memory_space<vmem>>, %arg4: memref<32x16xf32, #tpu.memory_space<vmem>>, %arg5: memref<1x16xf32, #tpu.memory_space<vmem>>, %arg6: memref<16x8xf32, #tpu.memory_space<vmem>>, %arg7: memref<1x8xf32, #tpu.memory_space<vmem>>, %arg8: memref<1x8xf32, #tpu.memory_space<vmem>>, %arg9: memref<1x1xf32, #tpu.memory_space<vmem>>, %arg10: memref<1x8xf32, #tpu.memory_space<vmem>>) attributes {dimension_semantics = [#tpu.dimension_semantics<parallel>], iteration_bounds = array<i64: 1>, scalar_prefetch = 0 : i64, scratch_operands = 0 : i64, tpu.core_type = #tpu.core_type<tc>, window_params = [{transform_indices = @transform_0, window_bounds = array<i64: 8, 16>}, {pipeline_mode = #tpu.pipeline_mode<synchronous>, transform_indices = @transform_1, window_bounds = array<i64: 16, 32>}, {pipeline_mode = #tpu.pipeline_mode<synchronous>, transform_indices = @transform_2, window_bounds = array<i64: 1, 32>}, {pipeline_mode = #tpu.pipeline_mode<synchronous>, transform_indices = @transform_3, window_bounds = array<i64: 32, 16>}, {pipeline_mode = #tpu.pipeline_mode<synchronous>, transform_indices = @transform_4, window_bounds = array<i64: 1, 16>}, {pipeline_mode = #tpu.pipeline_mode<synchronous>, transform_indices = @transform_5, window_bounds = array<i64: 16, 8>}, {pipeline_mode = #tpu.pipeline_mode<synchronous>, transform_indices = @transform_6, window_bounds = array<i64: 1, 8>}, {pipeline_mode = #tpu.pipeline_mode<synchronous>, transform_indices = @transform_7, window_bounds = array<i64: 1, 8>}, {pipeline_mode = #tpu.pipeline_mode<synchronous>, transform_indices = @transform_8, window_bounds = array<i64: 1, 1>}, {transform_indices = @transform_9, window_bounds = array<i64: 1, 8>}]} {
    %c0 = arith.constant 0 : index
    %c0_0 = arith.constant 0 : index
    %0 = vector.load %arg1[%c0, %c0_0] : memref<8x16xf32, #tpu.memory_space<vmem>>, vector<8x16xf32>
    %c0_1 = arith.constant 0 : index
    %c0_2 = arith.constant 0 : index
    %1 = vector.load %arg2[%c0_1, %c0_2] : memref<16x32xf32, #tpu.memory_space<vmem>>, vector<16x32xf32>
    %cst = arith.constant dense<0.000000e+00> : vector<8x32xf32>
    %2 = tpu.matmul %0, %1, %cst {dimension_numbers = #tpu.dot_dimension_numbers<[1], [0], [0], [1], [0, 0, 1, 1], [], []>} : vector<8x16xf32>, vector<16x32xf32>, vector<8x32xf32> -> vector<8x32xf32>
    %c0_3 = arith.constant 0 : index
    %c0_4 = arith.constant 0 : index
    %3 = vector.load %arg3[%c0_3, %c0_4] : memref<1x32xf32, #tpu.memory_space<vmem>>, vector<1x32xf32>
    %4 = vector.broadcast %3 : vector<1x32xf32> to vector<8x32xf32>
    %5 = arith.addf %2, %4 : vector<8x32xf32>
    %6 = math.tanh %5 : vector<8x32xf32>
    %c0_5 = arith.constant 0 : index
    %c0_6 = arith.constant 0 : index
    %7 = vector.load %arg4[%c0_5, %c0_6] : memref<32x16xf32, #tpu.memory_space<vmem>>, vector<32x16xf32>
    %cst_7 = arith.constant dense<0.000000e+00> : vector<8x16xf32>
    %8 = tpu.matmul %6, %7, %cst_7 {dimension_numbers = #tpu.dot_dimension_numbers<[1], [0], [0], [1], [0, 0, 1, 1], [], []>} : vector<8x32xf32>, vector<32x16xf32>, vector<8x16xf32> -> vector<8x16xf32>
    %c0_8 = arith.constant 0 : index
    %c0_9 = arith.constant 0 : index
    %9 = vector.load %arg5[%c0_8, %c0_9] : memref<1x16xf32, #tpu.memory_space<vmem>>, vector<1x16xf32>
    %10 = vector.broadcast %9 : vector<1x16xf32> to vector<8x16xf32>
    %11 = arith.addf %8, %10 : vector<8x16xf32>
    %12 = math.tanh %11 : vector<8x16xf32>
    %c0_10 = arith.constant 0 : index
    %c0_11 = arith.constant 0 : index
    %13 = vector.load %arg6[%c0_10, %c0_11] : memref<16x8xf32, #tpu.memory_space<vmem>>, vector<16x8xf32>
    %cst_12 = arith.constant dense<0.000000e+00> : vector<8x8xf32>
    %14 = tpu.matmul %12, %13, %cst_12 {dimension_numbers = #tpu.dot_dimension_numbers<[1], [0], [0], [1], [0, 0, 1, 1], [], []>} : vector<8x16xf32>, vector<16x8xf32>, vector<8x8xf32> -> vector<8x8xf32>
    %c0_13 = arith.constant 0 : index
    %c0_14 = arith.constant 0 : index
    %15 = vector.load %arg7[%c0_13, %c0_14] : memref<1x8xf32, #tpu.memory_space<vmem>>, vector<1x8xf32>
    %16 = vector.broadcast %15 : vector<1x8xf32> to vector<8x8xf32>
    %17 = arith.addf %14, %16 : vector<8x8xf32>
    %18 = math.tanh %17 : vector<8x8xf32>
    %c0_15 = arith.constant 0 : index
    %c0_16 = arith.constant 0 : index
    %19 = vector.load %arg8[%c0_15, %c0_16] : memref<1x8xf32, #tpu.memory_space<vmem>>, vector<1x8xf32>
    %cst_17 = arith.constant dense<0.000000e+00> : vector<1x8xf32>
    %20 = tpu.matmul %19, %18, %cst_17 {dimension_numbers = #tpu.dot_dimension_numbers<[1], [1], [0], [0], [0, 0, 1, 0], [], []>} : vector<1x8xf32>, vector<8x8xf32>, vector<1x8xf32> -> vector<1x8xf32>
    %c0_18 = arith.constant 0 : index
    %c0_19 = arith.constant 0 : index
    %21 = vector.load %arg9[%c0_18, %c0_19] : memref<1x1xf32, #tpu.memory_space<vmem>>, vector<1x1xf32>
    %22 = vector.broadcast %21 : vector<1x1xf32> to vector<1x8xf32>
    %23 = arith.addf %20, %22 : vector<1x8xf32>
    %c0_20 = arith.constant 0 : index
    %c0_21 = arith.constant 0 : index
    %24 = vector.load %arg10[%c0_20, %c0_21] : memref<1x8xf32, #tpu.memory_space<vmem>>, vector<1x8xf32>
    tpu.vector_store %arg10[%c0_20, %c0_21], %23 {strides = array<i32>} : memref<1x8xf32, #tpu.memory_space<vmem>>, vector<1x8xf32>,
    return
  }
  func.func @transform_0(%arg0: i32) -> (i32, i32) {
    %c0_i32 = arith.constant 0 : i32
    %c0_i32_0 = arith.constant 0 : i32
    return %arg0, %c0_i32 : i32, i32
  }
  func.func @transform_1(%arg0: i32) -> (i32, i32) {
    %c0_i32 = arith.constant 0 : i32
    %c0_i32_0 = arith.constant 0 : i32
    %c0_i32_1 = arith.constant 0 : i32
    return %c0_i32, %c0_i32_0 : i32, i32
  }
  func.func @transform_2(%arg0: i32) -> (i32, i32) {
    %c0_i32 = arith.constant 0 : i32
    %c0_i32_0 = arith.constant 0 : i32
    %c0_i32_1 = arith.constant 0 : i32
    return %c0_i32, %c0_i32_0 : i32, i32
  }
  func.func @transform_3(%arg0: i32) -> (i32, i32) {
    %c0_i32 = arith.constant 0 : i32
    %c0_i32_0 = arith.constant 0 : i32
    %c0_i32_1 = arith.constant 0 : i32
    return %c0_i32, %c0_i32_0 : i32, i32
  }
  func.func @transform_4(%arg0: i32) -> (i32, i32) {
    %c0_i32 = arith.constant 0 : i32
    %c0_i32_0 = arith.constant 0 : i32
    %c0_i32_1 = arith.constant 0 : i32
    return %c0_i32, %c0_i32_0 : i32, i32
  }
  func.func @transform_5(%arg0: i32) -> (i32, i32) {
    %c0_i32 = arith.constant 0 : i32
    %c0_i32_0 = arith.constant 0 : i32
    %c0_i32_1 = arith.constant 0 : i32
    return %c0_i32, %c0_i32_0 : i32, i32
  }
  func.func @transform_6(%arg0: i32) -> (i32, i32) {
    %c0_i32 = arith.constant 0 : i32
    %c0_i32_0 = arith.constant 0 : i32
    %c0_i32_1 = arith.constant 0 : i32
    return %c0_i32, %c0_i32_0 : i32, i32
  }
  func.func @transform_7(%arg0: i32) -> (i32, i32) {
    %c0_i32 = arith.constant 0 : i32
    %c0_i32_0 = arith.constant 0 : i32
    %c0_i32_1 = arith.constant 0 : i32
    return %c0_i32, %c0_i32_0 : i32, i32
  }
  func.func @transform_8(%arg0: i32) -> (i32, i32) {
    %c0_i32 = arith.constant 0 : i32
    %c0_i32_0 = arith.constant 0 : i32
    %c0_i32_1 = arith.constant 0 : i32
    return %c0_i32, %c0_i32_0 : i32, i32
  }
  func.func @transform_9(%arg0: i32) -> (i32, i32) {
    %c0_i32 = arith.constant 0 : i32
    %c0_i32_0 = arith.constant 0 : i32
    return %arg0, %c0_i32 : i32, i32
  }
}

</mosaic_0001>

<llo_original>
// kernel: tpu_custom_call.1
$region0: #{tpu_custom_call.1}
  #allocation0 [shape = 'u32[]', space=smem, size = 0x4, offset = 0x4, fixed_abs, tag = 'smem constant byte address 0x4 - core index']
  #allocation1 [shape = 'u32[144,128]{1,0:T(1,128)}', space=vmem, size = 0x12000, scoped, tag = 'internal scratch']
  #allocation2 [shape = 'f32[1,1]{1,0:T(1,128)S(1)}', space=vmem, size = 0x200, scoped, tag = 'scoped memory for tpu_custom_call.1']
  %s0 = inlined_call_operand.vmem [shape: f32[8,16], index: 0, kind: input, shape index: {}]
  %s1 = inlined_call_operand.vmem [shape: f32[16,32], index: 1, kind: input, shape index: {}]
  %s2 = inlined_call_operand.vmem [shape: f32[1,32], index: 2, kind: input, shape index: {}]
  %s3 = inlined_call_operand.vmem [shape: f32[32,16], index: 3, kind: input, shape index: {}]
  %s4 = inlined_call_operand.vmem [shape: f32[1,16], index: 4, kind: input, shape index: {}]
  %s5 = inlined_call_operand.vmem [shape: f32[16,8], index: 5, kind: input, shape index: {}]
  %s6 = inlined_call_operand.vmem [shape: f32[1,8], index: 6, kind: input, shape index: {}]
  %s7 = inlined_call_operand.vmem [shape: f32[1,8], index: 7, kind: input, shape index: {}]
  %s8 = inlined_call_operand.<no memory space> [shape: f32[1,1], index: 8, kind: input, shape index: {}]
  %s9 = inlined_call_operand.hbm [shape: f32[1,8], index: 9, kind: output, shape index: {}]
  %s10 = sld [smem:[#allocation0]]
  $region46: #{tpu_custom_call.1} parent=0
    _
  %s12 = ssub.s32 1, %s10
  %s13 = scalar_select 0, %s12, %s10
  %v14 = vstv %s8
  %15 = vst [vmem:[#allocation2] sm:$0x1] %v14
  $region1: #{tpu_custom_call.1} parent=0
    #allocation3 [shape = 'u8[512]{0}', space=vmem, size = 0x400, scoped, tag = 'output window, operand 0, single buffered']
    #allocation4 [shape = 's32[1]{0}', space=sflag, size = 0x4, scoped, tag = 'scoped memory for tpu_custom_call.1']
    %16 = vsyncpa [#allocation4], 0
    // Predicated region
    $region2: #{tpu_custom_call.1} parent=1 // pred_check
      _
    $region3: #{tpu_custom_call.1} parent=1 // pred_check_branch
      %18 = sbr.rel (0) target = $region5
    $region4: #{tpu_custom_call.1} parent=1 // pred_region
      _
    $region5: #{tpu_custom_call.1} parent=1 // pred_fallthru
      _
    // Predicated region
    $region6: #{tpu_custom_call.1} parent=1 // pred_check
      _
    $region7: #{tpu_custom_call.1} parent=1 // pred_check_branch
      %20 = sbr.rel (0) target = $region9
    $region8: #{tpu_custom_call.1} parent=1 // pred_region
      _
    $region9: #{tpu_custom_call.1} parent=1 // pred_fallthru
      _
    // Predicated region
    $region10: #{tpu_custom_call.1} parent=1 // pred_check
      _
    $region11: #{tpu_custom_call.1} parent=1 // pred_check_branch
      %22 = sbr.rel (0) target = $region13
    $region12: #{tpu_custom_call.1} parent=1 // pred_region
      _
    $region13: #{tpu_custom_call.1} parent=1 // pred_fallthru
      _
    // Predicated region
    $region14: #{tpu_custom_call.1} parent=1 // pred_check
      _
    $region15: #{tpu_custom_call.1} parent=1 // pred_check_branch
      %24 = sbr.rel (0) target = $region17
    $region16: #{tpu_custom_call.1} parent=1 // pred_region
      _
    $region17: #{tpu_custom_call.1} parent=1 // pred_fallthru
      _
    // Predicated region
    $region18: #{tpu_custom_call.1} parent=1 // pred_check
      _
    $region19: #{tpu_custom_call.1} parent=1 // pred_check_branch
      %26 = sbr.rel (0) target = $region21
    $region20: #{tpu_custom_call.1} parent=1 // pred_region
      _
    $region21: #{tpu_custom_call.1} parent=1 // pred_fallthru
      _
    // Predicated region
    $region22: #{tpu_custom_call.1} parent=1 // pred_check
      _
    $region23: #{tpu_custom_call.1} parent=1 // pred_check_branch
      %28 = sbr.rel (0) target = $region25
    $region24: #{tpu_custom_call.1} parent=1 // pred_region
      _
    $region25: #{tpu_custom_call.1} parent=1 // pred_fallthru
      _
    // Predicated region
    $region26: #{tpu_custom_call.1} parent=1 // pred_check
      _
    $region27: #{tpu_custom_call.1} parent=1 // pred_check_branch
      %30 = sbr.rel (0) target = $region29
    $region28: #{tpu_custom_call.1} parent=1 // pred_region
      _
    $region29: #{tpu_custom_call.1} parent=1 // pred_fallthru
      _
    // Predicated region
    $region30: #{tpu_custom_call.1} parent=1 // pred_check
      _
    $region31: #{tpu_custom_call.1} parent=1 // pred_check_branch
      %32 = sbr.rel (0) target = $region33
    $region32: #{tpu_custom_call.1} parent=1 // pred_region
      _
    $region33: #{tpu_custom_call.1} parent=1 // pred_fallthru
      _
    // Predicated region
    $region34: #{tpu_custom_call.1} parent=1 // pred_check
      _
    $region35: #{tpu_custom_call.1} parent=1 // pred_check_branch
      %34 = sbr.rel (0) target = $region37
    $region36: #{tpu_custom_call.1} parent=1 // pred_region
      _
    $region37: #{tpu_custom_call.1} parent=1 // pred_fallthru
      _
    %v35 = vld [vmem:[%s0] sm:$0xff]
    %v36 = vld [vmem:[%s1] sm:$0xff]
    %v37 = vld [vmem:[%s1 + $0x8] sm:$0xff]
    %v38 = vld [vmem:[%s2] sm:$0x1]
    %v40 = vlaneseq
    %v41 = vshrl.u32 %v40, 7
    %v42 = vsub.s32 0, %v41
    %v43 = vrot.slane %v38, %v42
    %vm45 = vcmask 130048
    %v47 = vsel %vm45, %v35, 0
    %49 = vmatprep.subr.mxu0 0.0
    %50 = vmatpush1.msra.mxu0 0.0
    %51 = vmatprep.subr.mxu0 0.0
    %52 = vmatpush1.msra.mxu0 0.0
    %53 = vmatprep.subr.mxu0 0.0
    %54 = vmatpush1.msra.mxu0 0.0
    %55 = vmatprep.subr.mxu0 0.0
    %56 = vmatpush1.msra.mxu0 0.0
    %57 = vmatprep.subr.mxu0 0.0
    %58 = vmatpush1.msra.mxu0 0.0
    %59 = vmatprep.subr.mxu0 0.0
    %60 = vmatpush1.msra.mxu0 0.0
    %61 = vmatprep.subr.mxu0 0.0
    %62 = vmatpush1.msra.mxu0 0.0
    %63 = vmatprep.subr.mxu0 0.0
    %64 = vmatpush1.msra.mxu0 0.0
    %65 = vmatprep.subr.mxu0 0.0
    %66 = vmatpush1.msra.mxu0 0.0
    %67 = vmatprep.subr.mxu0 0.0
    %68 = vmatpush1.msra.mxu0 0.0
    %69 = vmatprep.subr.mxu0 0.0
    %70 = vmatpush1.msra.mxu0 0.0
    %71 = vmatprep.subr.mxu0 0.0
    %72 = vmatpush1.msra.mxu0 0.0
    %73 = vmatprep.subr.mxu0 0.0
    %74 = vmatpush1.msra.mxu0 0.0
    %75 = vmatprep.subr.mxu0 0.0
    %76 = vmatpush1.msra.mxu0 0.0
    %77 = vmatprep.subr.mxu0 0.0
    %78 = vmatpush1.msra.mxu0 %v37
    %79 = vmatprep.subr.mxu0 0.0
    %80 = vmatpush1.msra.mxu0 %v36
    %81 = vmatprep.subr.mxu0 0.0
    %82 = vmatpush2.msra.mxu0 0.0
    %83 = vmatprep.subr.mxu0 0.0
    %84 = vmatpush2.msra.mxu0 0.0
    %85 = vmatprep.subr.mxu0 0.0
    %86 = vmatpush2.msra.mxu0 0.0
    %87 = vmatprep.subr.mxu0 0.0
    %88 = vmatpush2.msra.mxu0 0.0
    %89 = vmatprep.subr.mxu0 0.0
    %90 = vmatpush2.msra.mxu0 0.0
    %91 = vmatprep.subr.mxu0 0.0
    %92 = vmatpush2.msra.mxu0 0.0
    %93 = vmatprep.subr.mxu0 0.0
    %94 = vmatpush2.msra.mxu0 0.0
    %95 = vmatprep.subr.mxu0 0.0
    %96 = vmatpush2.msra.mxu0 0.0
    %97 = vmatprep.subr.mxu0 0.0
    %98 = vmatpush2.msra.mxu0 0.0
    %99 = vmatprep.subr.mxu0 0.0
    %100 = vmatpush2.msra.mxu0 0.0
    %101 = vmatprep.subr.mxu0 0.0
    %102 = vmatpush2.msra.mxu0 0.0
    %103 = vmatprep.subr.mxu0 0.0
    %104 = vmatpush2.msra.mxu0 0.0
    %105 = vmatprep.subr.mxu0 0.0
    %106 = vmatpush2.msra.mxu0 0.0
    %107 = vmatprep.subr.mxu0 0.0
    %108 = vmatpush2.msra.mxu0 0.0
    %109 = vmatprep.subr.mxu0 0.0
    %110 = vmatpush2.msra.mxu0 0.0
    %111 = vmatprep.subr.mxu0 0.0
    %112 = vmatpush2.msra.mxu0 0.0
    %113 = vmatprep.mubr.f32.mxu0 0.0
    %114 = vmatmul.mubr.f32.gmra.mxu0 %v47
    %v115 = vpop.f32.mrf.mxu0
    %v116 = vadd.f32 %v43, %v115
    %v117 = vpop.f32.mrf.mxu0
    %118 = vdwg.mxu0
    %v119 = vtanh.pop %v116
    %v120 = vld [vmem:[%s3] sm:$0xff]
    %v121 = vld [vmem:[%s3 + $0x8] sm:$0xff]
    %v122 = vld [vmem:[%s3 + $0x10] sm:$0xff]
    %v123 = vld [vmem:[%s3 + $0x18] sm:$0xff]
    %v124 = vld [vmem:[%s4] sm:$0x1]
    %v126 = vlaneseq
    %v127 = vshrl.u32 %v126, 7
    %v128 = vsub.s32 0, %v127
    %v129 = vrot.slane %v124, %v128
    %vm131 = vcmask 261120
    %v133 = vsel %vm131, %v119, 0
    %135 = vmatprep.subr.mxu0 0.0
    %136 = vmatpush1.msra.mxu0 0.0
    %137 = vmatprep.subr.mxu0 0.0
    %138 = vmatpush1.msra.mxu0 0.0
    %139 = vmatprep.subr.mxu0 0.0
    %140 = vmatpush1.msra.mxu0 0.0
    %141 = vmatprep.subr.mxu0 0.0
    %142 = vmatpush1.msra.mxu0 0.0
    %143 = vmatprep.subr.mxu0 0.0
    %144 = vmatpush1.msra.mxu0 0.0
    %145 = vmatprep.subr.mxu0 0.0
    %146 = vmatpush1.msra.mxu0 0.0
    %147 = vmatprep.subr.mxu0 0.0
    %148 = vmatpush1.msra.mxu0 0.0
    %149 = vmatprep.subr.mxu0 0.0
    %150 = vmatpush1.msra.mxu0 0.0
    %151 = vmatprep.subr.mxu0 0.0
    %152 = vmatpush1.msra.mxu0 0.0
    %153 = vmatprep.subr.mxu0 0.0
    %154 = vmatpush1.msra.mxu0 0.0
    %155 = vmatprep.subr.mxu0 0.0
    %156 = vmatpush1.msra.mxu0 0.0
    %157 = vmatprep.subr.mxu0 0.0
    %158 = vmatpush1.msra.mxu0 0.0
    %159 = vmatprep.subr.mxu0 0.0
    %160 = vmatpush1.msra.mxu0 %v123
    %161 = vmatprep.subr.mxu0 0.0
    %162 = vmatpush1.msra.mxu0 %v122
    %163 = vmatprep.subr.mxu0 0.0
    %164 = vmatpush1.msra.mxu0 %v121
    %165 = vmatprep.subr.mxu0 0.0
    %166 = vmatpush1.msra.mxu0 %v120
    %167 = vmatprep.subr.mxu0 0.0
    %168 = vmatpush2.msra.mxu0 0.0
    %169 = vmatprep.subr.mxu0 0.0
    %170 = vmatpush2.msra.mxu0 0.0
    %171 = vmatprep.subr.mxu0 0.0
    %172 = vmatpush2.msra.mxu0 0.0
    %173 = vmatprep.subr.mxu0 0.0
    %174 = vmatpush2.msra.mxu0 0.0
    %175 = vmatprep.subr.mxu0 0.0
    %176 = vmatpush2.msra.mxu0 0.0
    %177 = vmatprep.subr.mxu0 0.0
    %178 = vmatpush2.msra.mxu0 0.0
    %179 = vmatprep.subr.mxu0 0.0
    %180 = vmatpush2.msra.mxu0 0.0
    %181 = vmatprep.subr.mxu0 0.0
    %182 = vmatpush2.msra.mxu0 0.0
    %183 = vmatprep.subr.mxu0 0.0
    %184 = vmatpush2.msra.mxu0 0.0
    %185 = vmatprep.subr.mxu0 0.0
    %186 = vmatpush2.msra.mxu0 0.0
    %187 = vmatprep.subr.mxu0 0.0
    %188 = vmatpush2.msra.mxu0 0.0
    %189 = vmatprep.subr.mxu0 0.0
    %190 = vmatpush2.msra.mxu0 0.0
    %191 = vmatprep.subr.mxu0 0.0
    %192 = vmatpush2.msra.mxu0 0.0
    %193 = vmatprep.subr.mxu0 0.0
    %194 = vmatpush2.msra.mxu0 0.0
    %195 = vmatprep.subr.mxu0 0.0
    %196 = vmatpush2.msra.mxu0 0.0
    %197 = vmatprep.subr.mxu0 0.0
    %198 = vmatpush2.msra.mxu0 0.0
    %199 = vmatprep.mubr.f32.mxu0 0.0
    %200 = vmatmul.mubr.f32.gmra.mxu0 %v133
    %v201 = vpop.f32.mrf.mxu0
    %v202 = vadd.f32 %v129, %v201
    %v203 = vpop.f32.mrf.mxu0
    %204 = vdwg.mxu0
    %v205 = vtanh.pop %v202
    %v206 = vld [vmem:[%s5] sm:$0xff]
    %v207 = vld [vmem:[%s5 + $0x8] sm:$0xff]
    %v208 = vld [vmem:[%s6] sm:$0x1]
    %v210 = vlaneseq
    %v211 = vshrl.u32 %v210, 7
    %v212 = vsub.s32 0, %v211
    %v213 = vrot.slane %v208, %v212
    %v216 = vsel %vm45, %v205, 0
    %218 = vmatprep.subr.mxu0 0.0
    %219 = vmatpush1.msra.mxu0 0.0
    %220 = vmatprep.subr.mxu0 0.0
    %221 = vmatpush1.msra.mxu0 0.0
    %222 = vmatprep.subr.mxu0 0.0
    %223 = vmatpush1.msra.mxu0 0.0
    %224 = vmatprep.subr.mxu0 0.0
    %225 = vmatpush1.msra.mxu0 0.0
    %226 = vmatprep.subr.mxu0 0.0
    %227 = vmatpush1.msra.mxu0 0.0
    %228 = vmatprep.subr.mxu0 0.0
    %229 = vmatpush1.msra.mxu0 0.0
    %230 = vmatprep.subr.mxu0 0.0
    %231 = vmatpush1.msra.mxu0 0.0
    %232 = vmatprep.subr.mxu0 0.0
    %233 = vmatpush1.msra.mxu0 0.0
    %234 = vmatprep.subr.mxu0 0.0
    %235 = vmatpush1.msra.mxu0 0.0
    %236 = vmatprep.subr.mxu0 0.0
    %237 = vmatpush1.msra.mxu0 0.0
    %238 = vmatprep.subr.mxu0 0.0
    %239 = vmatpush1.msra.mxu0 0.0
    %240 = vmatprep.subr.mxu0 0.0
    %241 = vmatpush1.msra.mxu0 0.0
    %242 = vmatprep.subr.mxu0 0.0
    %243 = vmatpush1.msra.mxu0 0.0
    %244 = vmatprep.subr.mxu0 0.0
    %245 = vmatpush1.msra.mxu0 0.0
    %246 = vmatprep.subr.mxu0 0.0
    %247 = vmatpush1.msra.mxu0 %v207
    %248 = vmatprep.subr.mxu0 0.0
    %249 = vmatpush1.msra.mxu0 %v206
    %250 = vmatprep.subr.mxu0 0.0
    %251 = vmatpush2.msra.mxu0 0.0
    %252 = vmatprep.subr.mxu0 0.0
    %253 = vmatpush2.msra.mxu0 0.0
    %254 = vmatprep.subr.mxu0 0.0
    %255 = vmatpush2.msra.mxu0 0.0
    %256 = vmatprep.subr.mxu0 0.0
    %257 = vmatpush2.msra.mxu0 0.0
    %258 = vmatprep.subr.mxu0 0.0
    %259 = vmatpush2.msra.mxu0 0.0
    %260 = vmatprep.subr.mxu0 0.0
    %261 = vmatpush2.msra.mxu0 0.0
    %262 = vmatprep.subr.mxu0 0.0
    %263 = vmatpush2.msra.mxu0 0.0
    %264 = vmatprep.subr.mxu0 0.0
    %265 = vmatpush2.msra.mxu0 0.0
    %266 = vmatprep.subr.mxu0 0.0
    %267 = vmatpush2.msra.mxu0 0.0
    %268 = vmatprep.subr.mxu0 0.0
    %269 = vmatpush2.msra.mxu0 0.0
    %270 = vmatprep.subr.mxu0 0.0
    %271 = vmatpush2.msra.mxu0 0.0
    %272 = vmatprep.subr.mxu0 0.0
    %273 = vmatpush2.msra.mxu0 0.0
    %274 = vmatprep.subr.mxu0 0.0
    %275 = vmatpush2.msra.mxu0 0.0
    %276 = vmatprep.subr.mxu0 0.0
    %277 = vmatpush2.msra.mxu0 0.0
    %278 = vmatprep.subr.mxu0 0.0
    %279 = vmatpush2.msra.mxu0 0.0
    %280 = vmatprep.subr.mxu0 0.0
    %281 = vmatpush2.msra.mxu0 0.0
    %282 = vmatprep.mubr.f32.mxu0 0.0
    %283 = vmatmul.mubr.f32.gmra.mxu0 %v216
    %v284 = vpop.f32.mrf.mxu0
    %v285 = vadd.f32 %v213, %v284
    %v286 = vpop.f32.mrf.mxu0
    %287 = vdwg.mxu0
    %v288 = vtanh.pop %v285
    %v289 = vld [vmem:[%s7] sm:$0x1]
    %v290 = vld [vmem:[#allocation2] sm:$0x1]
    %292 = vset.pattern.permute.xlu0 0
    %293 = vperm.xlu0 %292, %v290
    %v294 = vpop.permute.xlu0 %293
    %v296 = vlaneseq
    %v297 = vshrl.u32 %v296, 7
    %v298 = vsub.s32 0, %v297
    %v299 = vrot.slane %v294, %v298
    %vm300 = vcmask 64512
    %v302 = vsel %vm300, %v289, 0
    %v305 = vsel %vm300, %v288, 0
    %307 = vmatprep.subr.mxu0 0.0
    %308 = vmatpush1.xpose.msra.mxu0 0.0
    %309 = vmatprep.subr.mxu0 0.0
    %310 = vmatpush1.xpose.msra.mxu0 0.0
    %311 = vmatprep.subr.mxu0 0.0
    %312 = vmatpush1.xpose.msra.mxu0 0.0
    %313 = vmatprep.subr.mxu0 0.0
    %314 = vmatpush1.xpose.msra.mxu0 0.0
    %315 = vmatprep.subr.mxu0 0.0
    %316 = vmatpush1.xpose.msra.mxu0 0.0
    %317 = vmatprep.subr.mxu0 0.0
    %318 = vmatpush1.xpose.msra.mxu0 0.0
    %319 = vmatprep.subr.mxu0 0.0
    %320 = vmatpush1.xpose.msra.mxu0 0.0
    %321 = vmatprep.subr.mxu0 0.0
    %322 = vmatpush1.xpose.msra.mxu0 0.0
    %323 = vmatprep.subr.mxu0 0.0
    %324 = vmatpush1.xpose.msra.mxu0 0.0
    %325 = vmatprep.subr.mxu0 0.0
    %326 = vmatpush1.xpose.msra.mxu0 0.0
    %327 = vmatprep.subr.mxu0 0.0
    %328 = vmatpush1.xpose.msra.mxu0 0.0
    %329 = vmatprep.subr.mxu0 0.0
    %330 = vmatpush1.xpose.msra.mxu0 0.0
    %331 = vmatprep.subr.mxu0 0.0
    %332 = vmatpush1.xpose.msra.mxu0 0.0
    %333 = vmatprep.subr.mxu0 0.0
    %334 = vmatpush1.xpose.msra.mxu0 0.0
    %335 = vmatprep.subr.mxu0 0.0
    %336 = vmatpush1.xpose.msra.mxu0 0.0
    %337 = vmatprep.subr.mxu0 0.0
    %338 = vmatpush1.xpose.msra.mxu0 %v305
    %339 = vmatprep.subr.mxu0 0.0
    %340 = vmatpush2.xpose.msra.mxu0 0.0
    %341 = vmatprep.subr.mxu0 0.0
    %342 = vmatpush2.xpose.msra.mxu0 0.0
    %343 = vmatprep.subr.mxu0 0.0
    %344 = vmatpush2.xpose.msra.mxu0 0.0
    %345 = vmatprep.subr.mxu0 0.0
    %346 = vmatpush2.xpose.msra.mxu0 0.0
    %347 = vmatprep.subr.mxu0 0.0
    %348 = vmatpush2.xpose.msra.mxu0 0.0
    %349 = vmatprep.subr.mxu0 0.0
    %350 = vmatpush2.xpose.msra.mxu0 0.0
    %351 = vmatprep.subr.mxu0 0.0
    %352 = vmatpush2.xpose.msra.mxu0 0.0
    %353 = vmatprep.subr.mxu0 0.0
    %354 = vmatpush2.xpose.msra.mxu0 0.0
    %355 = vmatprep.subr.mxu0 0.0
    %356 = vmatpush2.xpose.msra.mxu0 0.0
    %357 = vmatprep.subr.mxu0 0.0
    %358 = vmatpush2.xpose.msra.mxu0 0.0
    %359 = vmatprep.subr.mxu0 0.0
    %360 = vmatpush2.xpose.msra.mxu0 0.0
    %361 = vmatprep.subr.mxu0 0.0
    %362 = vmatpush2.xpose.msra.mxu0 0.0
    %363 = vmatprep.subr.mxu0 0.0
    %364 = vmatpush2.xpose.msra.mxu0 0.0
    %365 = vmatprep.subr.mxu0 0.0
    %366 = vmatpush2.xpose.msra.mxu0 0.0
    %367 = vmatprep.subr.mxu0 0.0
    %368 = vmatpush2.xpose.msra.mxu0 0.0
    %369 = vmatprep.subr.mxu0 0.0
    %370 = vmatpush2.xpose.msra.mxu0 0.0
    %371 = vmatprep.mubr.f32.mxu0 0.0
    %372 = vmatmul.mubr.f32.gmra.mxu0 %v302
    %v373 = vpop.f32.mrf.mxu0
    %v374 = vadd.f32 %v299, %v373
    %v375 = vpop.f32.mrf.mxu0
    %376 = vdwg.mxu0
    %vm377 = vcmask 57344
    %378 = vst.msk [vmem:[#allocation3] sm:$0x1] %vm377, %v374
    // Predicated region
    $region38: #{tpu_custom_call.1} parent=1 // pred_check
      _
    $region39: #{tpu_custom_call.1} parent=1 // pred_check_branch
      %380 = sbr.rel (0) target = $region41
    $region40: #{tpu_custom_call.1} parent=1 // pred_region
      %s382 = ssub.s32 16, 16
      %383 = vsyncadd [#allocation4], %s382
      %s385 = sshll.u32 [#allocation3], 4
      %s386 = int_to_ptr.vmem [resolvable:$true] %s385
      %388 = dma.vmem_to_hbm [thread:$0]  %s386, 16, %s9, [#allocation4]
    $region41: #{tpu_custom_call.1} parent=1 // pred_fallthru
      _
    // Predicated region
    $region42: #{tpu_custom_call.1} parent=1 // pred_check
      _
    $region43: #{tpu_custom_call.1} parent=1 // pred_check_branch
      %390 = sbr.rel (0) target = $region45
    $region44: #{tpu_custom_call.1} parent=1 // pred_region
      %391 = dma.done [#allocation4], 16
    $region45: #{tpu_custom_call.1} parent=1 // pred_fallthru
      _
    %392 = vsyncpa [#allocation4], 1

</llo_original>
